<compile_context>
chip_gen: v7x
topology: tpu7x:2x2x1
jax: 0.10.0
libtpu: 0.0.40
codegen_flags: <defaults>
</compile_context>

<pallas_src>
import functools

import jax
import jax.numpy as jnp
from jax import lax
from jax.experimental import pallas as pl
from jax.experimental.pallas import tpu as pltpu


_MARGIN = 0.2
_LANE = 128
# 8192 rows * 128 lanes * 4 B = 4 MiB per input per buffer (f32); 2 inputs x 2
# buffers = 16 MiB, comfortably inside the 32 MiB scoped-VMEM limit we set
# explicitly (and with headroom on v7x's 64 MiB physical VMEM).
_MAX_TILE_ROWS = 8192
_VMEM_LIMIT_BYTES = 32 * 1024 * 1024


def _round_up(x, m):
    return ((x + m - 1) // m) * m


def _triplet_loss_kernel(p_ref, n_ref, o_ref, *, margin, tile_rows,
                         tiles_per_shard, valid_rows):
    c = pl.program_id(0)          # core shard (parallel axis)
    i = pl.program_id(1)          # row tile within the shard (reduction axis)

    @pl.when(i == 0)
    def _init():
        o_ref[...] = jnp.zeros_like(o_ref)

    # (anchor - positive) - (anchor - negative) == negative - positive, so the
    # anchor stream is never read.  Cast to f32 inside the kernel (inputs may
    # be bf16, halving HBM traffic).
    p = p_ref[...].astype(jnp.float32)
    n = n_ref[...].astype(jnp.float32)
    hinge = jnp.maximum(n - p + jnp.float32(margin), 0.0)

    # Mask rows past the true row count: covers the partial last tile and any
    # ghost tile on the last shard (whose DMA block index was clamped in the
    # index_map).  Garbage (even NaN) in masked rows is discarded by the select.
    tile_idx = c * tiles_per_shard + i
    row0 = tile_idx * tile_rows
    row_ids = row0 + lax.broadcasted_iota(jnp.int32, (tile_rows, 1), 0)
    hinge = jnp.where(row_ids < valid_rows, hinge, 0.0)

    # vreg-shaped accumulation straight into the resident output block:
    # one VPU add per (8,128) vreg of data, no per-tile cross-lane reduce.
    o_ref[...] += hinge.reshape(tile_rows // 8, 8, _LANE).sum(axis=0)


def triplet_loss(anchor, positive, negative, margin=_MARGIN):
    """Pallas TPU implementation of TripletLoss.forward. Returns scalar f32."""
    assert anchor.shape == positive.shape == negative.shape
    n_elems = int(anchor.size)
    if n_elems == 0:
        return jnp.float32(0.0)

    # Anchor cancels algebraically; only positive/negative are streamed.
    p_flat = jnp.ravel(positive)
    n_flat = jnp.ravel(negative)

    rows = n_elems // _LANE
    tail = n_elems - rows * _LANE

    # Ragged tail (< 128 elements): trivial plain-JAX hinge sum, no pad copy.
    tail_sum = jnp.float32(0.0)
    if tail:
        p_t = p_flat[rows * _LANE:].astype(jnp.float32)
        n_t = n_flat[rows * _LANE:].astype(jnp.float32)
        tail_sum = jnp.sum(jnp.maximum(n_t - p_t + jnp.float32(margin), 0.0))

    if rows == 0:
        return tail_sum / jnp.float32(n_elems)

    p2 = p_flat[: rows * _LANE].reshape(rows, _LANE)
    n2 = n_flat[: rows * _LANE].reshape(rows, _LANE)

    itemsize = jnp.dtype(positive.dtype).itemsize
    sublane_mult = 8 * max(1, 4 // itemsize)       # f32: 8, bf16: 16, int8: 32
    tile_rows = min(_MAX_TILE_ROWS, _round_up(rows, sublane_mult))
    num_tiles = pl.cdiv(rows, tile_rows)

    # Shard the tile loop over 2 TensorCores (v7x); harmless on v5e/v6e.
    num_shards = 2 if num_tiles > 1 else 1
    tiles_per_shard = pl.cdiv(num_tiles, num_shards)

    def in_map(c, i):
        # Clamp so ghost steps on the last shard never DMA out of bounds;
        # their contribution is zeroed by the in-kernel row mask.
        return (jnp.minimum(c * tiles_per_shard + i, num_tiles - 1), 0)

    kernel = functools.partial(
        _triplet_loss_kernel,
        margin=float(margin),
        tile_rows=tile_rows,
        tiles_per_shard=tiles_per_shard,
        valid_rows=rows,
    )

    cost = pl.CostEstimate(
        flops=3 * n_elems,                           # sub, add, max per element
        transcendentals=0,
        bytes_accessed=2 * rows * _LANE * itemsize + num_shards * 8 * _LANE * 4,
    )

    partials = pl.pallas_call(
        kernel,
        out_shape=jax.ShapeDtypeStruct((num_shards * 8, _LANE), jnp.float32),
        grid_spec=pltpu.PrefetchScalarGridSpec(
            num_scalar_prefetch=0,
            grid=(num_shards, tiles_per_shard),
            in_specs=[
                pl.BlockSpec((tile_rows, _LANE), in_map),
                pl.BlockSpec((tile_rows, _LANE), in_map),
            ],
            out_specs=pl.BlockSpec((8, _LANE), lambda c, i: (c, 0)),
        ),
        compiler_params=pltpu.CompilerParams(
            dimension_semantics=("parallel", "arbitrary"),
            vmem_limit_bytes=_VMEM_LIMIT_BYTES,
        ),
        cost_estimate=cost,
    )(p2, n2)

    return (jnp.sum(partials) + tail_sum) / jnp.float32(n_elems)


def _reference_loss(anchor, positive, negative, margin=_MARGIN):
    """Plain-JAX reference mirroring the PyTorch TripletLoss forward."""
    a = anchor.astype(jnp.float32)
    p = positive.astype(jnp.float32)
    n = negative.astype(jnp.float32)
    pos_dist = a - p
    neg_dist = a - n
    return jnp.mean(jnp.maximum(pos_dist - neg_dist + margin, 0.0))


if __name__ == "__main__":
    key = jax.random.PRNGKey(0)
    ka, kp, kn = jax.random.split(key, 3)

    # Main case: (batch, channels, H, W) = (2, 4, 16, 16) -> 2048 elements.
    shape = (2, 4, 16, 16)
    anchor = jax.random.normal(ka, shape, dtype=jnp.float32)
    positive = jax.random.normal(kp, shape, dtype=jnp.float32)
    negative = jax.random.normal(kn, shape, dtype=jnp.float32)
    loss = triplet_loss(anchor, positive, negative)
    jax.block_until_ready(loss)
    ref = _reference_loss(anchor, positive, negative)
    assert jnp.allclose(loss, ref, atol=1e-5, rtol=1e-5), (loss, ref)

    # Ragged case: exercises the partial last tile + <128-element tail path.
    shape2 = (2, 3, 10, 11)
    a2 = jax.random.normal(ka, shape2, dtype=jnp.float32)
    p2 = jax.random.normal(kp, shape2, dtype=jnp.float32)
    n2 = jax.random.normal(kn, shape2, dtype=jnp.float32)
    loss2 = triplet_loss(a2, p2, n2)
    jax.block_until_ready(loss2)
    ref2 = _reference_loss(a2, p2, n2)
    assert jnp.allclose(loss2, ref2, atol=1e-5, rtol=1e-5), (loss2, ref2)

    # bf16 case: exercises the 16-row sublane-packed tile alignment.
    shape3 = (4, 4, 16, 16)
    a3 = jax.random.normal(ka, shape3, dtype=jnp.bfloat16)
    p3 = jax.random.normal(kp, shape3, dtype=jnp.bfloat16)
    n3 = jax.random.normal(kn, shape3, dtype=jnp.bfloat16)
    loss3 = triplet_loss(a3, p3, n3)
    jax.block_until_ready(loss3)
    ref3 = _reference_loss(a3, p3, n3)
    assert jnp.allclose(loss3, ref3, atol=1e-4, rtol=1e-4), (loss3, ref3)

    print("KERNEL_OK")
</pallas_src>

<mosaic_0001>
module attributes {stable_mosaic.version = 11 : i64} {
  func.func @_triplet_loss_kernel(%arg0: i32, %arg1: i32, %arg2: memref<16x128xf32, #tpu.memory_space<vmem>>, %arg3: memref<16x128xf32, #tpu.memory_space<vmem>>, %arg4: memref<8x128xf32, #tpu.memory_space<vmem>>) attributes {dimension_semantics = [#tpu.dimension_semantics<parallel>, #tpu.dimension_semantics<arbitrary>], iteration_bounds = array<i64: 1, 1>, scalar_prefetch = 0 : i64, scratch_operands = 0 : i64, tpu.core_type = #tpu.core_type<tc>, window_params = [{transform_indices = @transform_0, window_bounds = array<i64: 16, 128>}, {transform_indices = @transform_1, window_bounds = array<i64: 16, 128>}, {transform_indices = @transform_2, window_bounds = array<i64: 8, 128>}]} {
    %c0_i32 = arith.constant 0 : i32
    %0 = arith.cmpi eq, %arg1, %c0_i32 : i32
    %1 = arith.extui %0 : i1 to i32
    %c0_i32_0 = arith.constant 0 : i32
    %2 = arith.cmpi ne, %1, %c0_i32_0 : i32
    scf.if %2 {
      %cst_12 = arith.constant 0.000000e+00 : f32
      %27 = vector.broadcast %cst_12 : f32 to vector<8x128xf32>
      %c0_13 = arith.constant 0 : index
      %c0_14 = arith.constant 0 : index
      %28 = vector.load %arg4[%c0_13, %c0_14] : memref<8x128xf32, #tpu.memory_space<vmem>>, vector<8x128xf32>
      tpu.vector_store %arg4[%c0_13, %c0_14], %27 {strides = array<i32>} : memref<8x128xf32, #tpu.memory_space<vmem>>, vector<8x128xf32>,
    } else {
    }
    %c0 = arith.constant 0 : index
    %c0_1 = arith.constant 0 : index
    %3 = vector.load %arg2[%c0, %c0_1] : memref<16x128xf32, #tpu.memory_space<vmem>>, vector<16x128xf32>
    %c0_2 = arith.constant 0 : index
    %c0_3 = arith.constant 0 : index
    %4 = vector.load %arg3[%c0_2, %c0_3] : memref<16x128xf32, #tpu.memory_space<vmem>>, vector<16x128xf32>
    %5 = arith.subf %4, %3 : vector<16x128xf32>
    %cst = arith.constant 2.000000e-01 : f32
    %6 = vector.broadcast %cst : f32 to vector<16x128xf32>
    %7 = arith.addf %5, %6 : vector<16x128xf32>
    %cst_4 = arith.constant 0.000000e+00 : f32
    %8 = vector.broadcast %cst_4 : f32 to vector<16x128xf32>
    %9 = arith.maximumf %7, %8 : vector<16x128xf32>
    %c1_i32 = arith.constant 1 : i32
    %10 = arith.muli %arg0, %c1_i32 : i32
    %11 = arith.addi %10, %arg1 : i32
    %c16_i32 = arith.constant 16 : i32
    %12 = arith.muli %11, %c16_i32 : i32
    %13 = tpu.iota {dimensions = array<i32: 0>} : vector<16x1xi32>
    %14 = vector.broadcast %12 : i32 to vector<16x1xi32>
    %15 = arith.addi %14, %13 : vector<16x1xi32>
    %c16_i32_5 = arith.constant 16 : i32
    %16 = vector.broadcast %c16_i32_5 : i32 to vector<16x1xi32>
    %17 = arith.cmpi slt, %15, %16 : vector<16x1xi32>
    %cst_6 = arith.constant 0.000000e+00 : f32
    %18 = vector.shape_cast %17 : vector<16x1xi1> to vector<16x1xi1>
    %19 = vector.broadcast %18 : vector<16x1xi1> to vector<16x128xi1>
    %20 = vector.broadcast %cst_6 : f32 to vector<16x128xf32>
    %21 = arith.select %19, %9, %20 : vector<16x128xi1>, vector<16x128xf32>
    %c0_7 = arith.constant 0 : index
    %c0_8 = arith.constant 0 : index
    %22 = vector.load %arg4[%c0_7, %c0_8] : memref<8x128xf32, #tpu.memory_space<vmem>>, vector<8x128xf32>
    %23 = vector.shape_cast %21 : vector<16x128xf32> to vector<2x8x128xf32>
    %cst_9 = arith.constant dense<0.000000e+00> : vector<8x128xf32>
    %24 = vector.multi_reduction <add>, %23, %cst_9 [0] : vector<2x8x128xf32> to vector<8x128xf32>
    %25 = arith.addf %22, %24 : vector<8x128xf32>
    %c0_10 = arith.constant 0 : index
    %c0_11 = arith.constant 0 : index
    %26 = vector.load %arg4[%c0_10, %c0_11] : memref<8x128xf32, #tpu.memory_space<vmem>>, vector<8x128xf32>
    tpu.vector_store %arg4[%c0_10, %c0_11], %25 {strides = array<i32>} : memref<8x128xf32, #tpu.memory_space<vmem>>, vector<8x128xf32>,
    return
  }
  func.func @transform_0(%arg0: i32, %arg1: i32) -> (i32, i32) {
    %c1_i32 = arith.constant 1 : i32
    %0 = arith.muli %arg0, %c1_i32 : i32
    %1 = arith.addi %0, %arg1 : i32
    %c0_i32 = arith.constant 0 : i32
    %2 = arith.minsi %1, %c0_i32 : i32
    %c0_i32_0 = arith.constant 0 : i32
    %c0_i32_1 = arith.constant 0 : i32
    return %2, %c0_i32_0 : i32, i32
  }
  func.func @transform_1(%arg0: i32, %arg1: i32) -> (i32, i32) {
    %c1_i32 = arith.constant 1 : i32
    %0 = arith.muli %arg0, %c1_i32 : i32
    %1 = arith.addi %0, %arg1 : i32
    %c0_i32 = arith.constant 0 : i32
    %2 = arith.minsi %1, %c0_i32 : i32
    %c0_i32_0 = arith.constant 0 : i32
    %c0_i32_1 = arith.constant 0 : i32
    return %2, %c0_i32_0 : i32, i32
  }
  func.func @transform_2(%arg0: i32, %arg1: i32) -> (i32, i32) {
    %c0_i32 = arith.constant 0 : i32
    %c0_i32_0 = arith.constant 0 : i32
    return %arg0, %c0_i32 : i32, i32
  }
}

</mosaic_0001>

<llo_original>
// kernel: tpu_custom_call.1
$region0: #{tpu_custom_call.1}
  #allocation0 [shape = 'u32[]', space=smem, size = 0x4, offset = 0x4, fixed_abs, tag = 'smem constant byte address 0x4 - core index']
  #allocation1 [shape = 'u32[144,128]{1,0:T(1,128)}', space=vmem, size = 0x12000, scoped, tag = 'internal scratch']
  %s0 = inlined_call_operand.hbm [shape: f32[16,128], index: 0, kind: input, shape index: {}]
  %s1 = inlined_call_operand.hbm [shape: f32[16,128], index: 1, kind: input, shape index: {}]
  %s2 = inlined_call_operand.hbm [shape: f32[8,128], index: 2, kind: output, shape index: {}]
  %s3 = sld [smem:[#allocation0]]
  $region30: #{tpu_custom_call.1} parent=0
    _
  %s5 = ssub.s32 1, %s3
  %s6 = scalar_select 0, %s5, %s3
  $region1: #{tpu_custom_call.1} parent=0
    #allocation2 [shape = 'u8[8192]{0}', space=vmem, size = 0x2000, scoped, tag = 'input window, operand 0, single buffered']
    #allocation3 [shape = 's32[1]{0}', space=sflag, size = 0x4, scoped, tag = 'scoped memory for tpu_custom_call.1']
    #allocation4 [shape = 's32[1]{0}', space=sflag, size = 0x4, scoped, tag = 'scoped memory for tpu_custom_call.1']
    #allocation5 [shape = 'u8[8192]{0}', space=vmem, size = 0x2000, scoped, tag = 'input window, operand 1, single buffered']
    #allocation6 [shape = 's32[1]{0}', space=sflag, size = 0x4, scoped, tag = 'scoped memory for tpu_custom_call.1']
    #allocation7 [shape = 'u8[4096]{0}', space=vmem, size = 0x1000, scoped, tag = 'output window, operand 0, single buffered']
    %7 = vsyncpa [#allocation3], 0
    %8 = vsyncpa [#allocation6], 0
    %9 = vsyncpa [#allocation4], 0
    // Predicated region
    $region2: #{tpu_custom_call.1} parent=1 // pred_check
      _
    $region3: #{tpu_custom_call.1} parent=1 // pred_check_branch
      %11 = sbr.rel (0) target = $region5
    $region4: #{tpu_custom_call.1} parent=1 // pred_region
      %s12 = sadd.s32 0, 0
      %p13 = scmp.lt.s32.totalorder %s12, 0
      %s14 = scalar_select %p13, %s12, 0
      %s15 = smul.u32 2, %s14
      %s17 = ssub.s32 256, 256
      %18 = vsyncadd [#allocation3], %s17
      %s19 = smul.addr %s15, 128
      %s20 = scalar_lea.hbm %s0, %s19
      %s21 = sshll.u32 [#allocation2], 4
      %s22 = int_to_ptr.vmem [resolvable:$true] %s21
      %27 = dma.hbm_to_vmem [thread:$0]  %s20, 256, %s22, [#allocation3], 128, 128, 8
    $region5: #{tpu_custom_call.1} parent=1 // pred_fallthru
      _
    // Predicated region
    $region6: #{tpu_custom_call.1} parent=1 // pred_check
      _
    $region7: #{tpu_custom_call.1} parent=1 // pred_check_branch
      %29 = sbr.rel (0) target = $region9
    $region8: #{tpu_custom_call.1} parent=1 // pred_region
      %s30 = sadd.s32 0, 0
      %p31 = scmp.lt.s32.totalorder %s30, 0
      %s32 = scalar_select %p31, %s30, 0
      %s33 = smul.u32 2, %s32
      %s35 = ssub.s32 256, 256
      %36 = vsyncadd [#allocation6], %s35
      %s37 = smul.addr %s33, 128
      %s38 = scalar_lea.hbm %s1, %s37
      %s39 = sshll.u32 [#allocation5], 4
      %s40 = int_to_ptr.vmem [resolvable:$true] %s39
      %45 = dma.hbm_to_vmem [thread:$0]  %s38, 256, %s40, [#allocation6], 128, 128, 8
    $region9: #{tpu_custom_call.1} parent=1 // pred_fallthru
      _
    // Predicated region
    $region10: #{tpu_custom_call.1} parent=1 // pred_check
      _
    $region11: #{tpu_custom_call.1} parent=1 // pred_check_branch
      %47 = sbr.rel (0) target = $region13
    $region12: #{tpu_custom_call.1} parent=1 // pred_region
      %48 = dma.done [#allocation3], 256
    $region13: #{tpu_custom_call.1} parent=1 // pred_fallthru
      _
    // Predicated region
    $region14: #{tpu_custom_call.1} parent=1 // pred_check
      _
    $region15: #{tpu_custom_call.1} parent=1 // pred_check_branch
      %50 = sbr.rel (0) target = $region17
    $region16: #{tpu_custom_call.1} parent=1 // pred_region
      %51 = dma.done [#allocation6], 256
    $region17: #{tpu_custom_call.1} parent=1 // pred_fallthru
      _
    %s52 = sadd.s32 0, 0
    %p53 = scmp.lt.s32.totalorder %s52, 0
    %s54 = scalar_select %p53, %s52, 0
    %s55 = smul.u32 2, %s54
    %s56 = sadd.s32 0, 0
    %p57 = scmp.lt.s32.totalorder %s56, 0
    %s58 = scalar_select %p57, %s56, 0
    %s59 = smul.u32 2, %s58
    %p60 = scmp.eq.s32.totalorder 0, 0
    // Predicated region
    $region18: #{tpu_custom_call.1} parent=1 // pred_check
      %p61 = pneg %p60
    $region19: #{tpu_custom_call.1} parent=1 // pred_check_branch
      %63 = sbr.rel (%p61) target = $region21
    $region20: #{tpu_custom_call.1} parent=1 // pred_region
      %64 = vst [vmem:[#allocation7] sm:$0xff] 0.0
    $region21: #{tpu_custom_call.1} parent=1 // pred_fallthru
      _
    %v65 = vld [vmem:[#allocation2] sm:$0xff]
    %v66 = vld [vmem:[#allocation2 + $0x8] sm:$0xff]
    %v67 = vld [vmem:[#allocation5] sm:$0xff]
    %v68 = vld [vmem:[#allocation5 + $0x8] sm:$0xff]
    %v69 = vsub.f32 %v67, %v65
    %v70 = vsub.f32 %v68, %v66
    %v71 = vadd.f32 %v69, 0.2
    %v72 = vadd.f32 %v70, 0.2
    %v73 = vmax.f32 %v71, 0.0
    %v74 = vmax.f32 %v72, 0.0
    %s75 = sadd.s32 0, 0
    %s76 = smul.u32 %s75, 16
    %v77 = vlaneseq
    %v78 = vshrl.u32 %v77, 7
    %v79 = vadd.s32 %v78, 8
    %v80 = vstv %s76
    %v81 = vadd.s32 %v80, %v78
    %v82 = vadd.s32 %v80, %v79
    %vm83 = vcmp.lt.s32.totalorder %v81, 16
    %vm84 = vcmp.lt.s32.totalorder %v82, 16
    %v85 = vsel %vm83, 1, 0
    %v86 = vsel %vm84, 1, 0
    %vm87 = vcmp.eq.s32.totalorder %v85, 1
    %vm88 = vcmp.eq.s32.totalorder %v86, 1
    %v89 = vsel %vm87, %v73, 0.0
    %v90 = vsel %vm88, %v74, 0.0
    %v91 = vld [vmem:[#allocation7] sm:$0xff]
    %v92 = vadd.f32 %v89, %v90
    %v93 = vadd.f32 %v91, %v92
    %94 = vst [vmem:[#allocation7] sm:$0xff] %v93
    // Predicated region
    $region22: #{tpu_custom_call.1} parent=1 // pred_check
      _
    $region23: #{tpu_custom_call.1} parent=1 // pred_check_branch
      %96 = sbr.rel (0) target = $region25
    $region24: #{tpu_custom_call.1} parent=1 // pred_region
      %s98 = ssub.s32 128, 128
      %99 = vsyncadd [#allocation4], %s98
      %s101 = sshll.u32 [#allocation7], 4
      %s102 = int_to_ptr.vmem [resolvable:$true] %s101
      %104 = dma.vmem_to_hbm [thread:$0]  %s102, 128, %s2, [#allocation4]
    $region25: #{tpu_custom_call.1} parent=1 // pred_fallthru
      _
    // Predicated region
    $region26: #{tpu_custom_call.1} parent=1 // pred_check
      _
    $region27: #{tpu_custom_call.1} parent=1 // pred_check_branch
      %106 = sbr.rel (0) target = $region29
    $region28: #{tpu_custom_call.1} parent=1 // pred_region
      %107 = dma.done [#allocation4], 128
    $region29: #{tpu_custom_call.1} parent=1 // pred_fallthru
      _
    %108 = vsyncpa [#allocation3], 1
    %109 = vsyncpa [#allocation6], 1
    %110 = vsyncpa [#allocation4], 1

</llo_original>
